<compile_context>
chip_gen: v6e
topology: v6e:2x2x1
jax: 0.10.0
libtpu: 0.0.40
codegen_flags: <defaults>
</compile_context>

<pallas_src>
import functools

import jax
import jax.numpy as jnp
from jax.experimental import pallas as pl
from jax.experimental.pallas import tpu as pltpu

ORIFEANUM = 16          # OriDataPool hard-codes 16 pooled channels
KERNEL_SIZE = 2
STRIDE = 2
_DEFAULT_TILE_N = 2048  # rows per grid step; in+out ~2 MiB (x2 double-buffered)


def _round_up(x, m):
    return (x + m - 1) // m * m


def _seqconvs_kernel(x_ref, w_ref, b_ref, o_ref, *, c_in):
    # x_ref block: (TILE_N, 2*c_in); columns = [even-step C_in | odd-step C_in]
    x = x_ref[...]

    # --- SeqCssModel hot path: Conv1d(k=2, s=2) as ONE MXU matmul ------------
    # (v6e/v7x: casting x / w to bf16 here would halve matmul HBM bytes; kept
    #  f32 so the result matches the f32 reference exactly.)
    conv = (jnp.dot(x, w_ref[...], preferred_element_type=jnp.float32)
            + b_ref[...])                                    # (TILE_N, crosssize)

    # --- OriDataPool on the first 16 channels --------------------------------
    pe = x[:, :ORIFEANUM]                                    # x[..., 0::2]
    po = x[:, c_in:c_in + ORIFEANUM]                         # x[..., 1::2]
    avg = 0.5 * (pe + po)                                    # AvgPool1d(2,2)
    mx = jnp.maximum(pe, po)                                 # MaxPool1d(2,2)
    mn = jnp.minimum(pe, po)                                 # -MaxPool1d(-x)

    # Per-channel selector built from a (1, 16) iota (broadcast over rows);
    # compile-time constant, folded by Mosaic.
    ch = jax.lax.broadcasted_iota(jnp.int32, (1, ORIFEANUM), 1)
    # channels 0-4 avg | 5 even-stride | 6 odd-stride | 7 max | 8 min
    # 9 odd-stride | 10-15 avg
    pool = jnp.where(ch == 5, pe,
           jnp.where((ch == 6) | (ch == 9), po,
           jnp.where(ch == 7, mx,
           jnp.where(ch == 8, mn, avg))))

    # Two static-offset sub-stores instead of an in-kernel lane concatenate.
    o_ref[:, :ORIFEANUM] = pool.astype(o_ref.dtype)
    o_ref[:, ORIFEANUM:] = conv.astype(o_ref.dtype)


def seqconvs_forward(x, w_conv, b_conv, *, tile_n=_DEFAULT_TILE_N):
    """x: (L, B, C_in) float32.  Returns (L//2, B, 16 + crosssize)."""
    L, B, c_in = x.shape
    crosssize = w_conv.shape[0]
    assert L % STRIDE == 0, "sequence length must be even (kernel=stride=2)"
    assert c_in >= ORIFEANUM, "OriDataPool needs at least 16 input channels"
    lout = L // STRIDE
    n = B * lout
    out_channels = ORIFEANUM + crosssize

    # (L, B, C) -> (N, 2*C) with rows (lout, b)-ordered: a single transpose of
    # the (lout, 2, B, C) view; the kernel output then reshapes directly to
    # (Lout, B, Cout) with no post-transpose.
    x_cat = jnp.transpose(x.reshape(lout, STRIDE, B, c_in),
                          (0, 2, 1, 3)).reshape(n, STRIDE * c_in)

    # Conv1d weight (crosssize, C_in, 2) -> stacked (2*C_in, crosssize) weight.
    w_cat = jnp.concatenate(
        [jnp.transpose(w_conv[:, :, 0]), jnp.transpose(w_conv[:, :, 1])], axis=0)
    bias = b_conv.reshape(1, crosssize)

    tile_n = min(tile_n, _round_up(n, 8))
    grid = (pl.cdiv(n, tile_n),)

    kernel = functools.partial(_seqconvs_kernel, c_in=c_in)
    out = pl.pallas_call(
        kernel,
        out_shape=jax.ShapeDtypeStruct((n, out_channels), jnp.float32),
        grid_spec=pltpu.PrefetchScalarGridSpec(
            num_scalar_prefetch=0,
            grid=grid,
            in_specs=[
                # row-tiled input slab
                pl.BlockSpec((tile_n, STRIDE * c_in), lambda i: (i, 0)),
                # weights / bias stay resident across grid steps
                pl.BlockSpec((STRIDE * c_in, crosssize), lambda i: (0, 0)),
                pl.BlockSpec((1, crosssize), lambda i: (0, 0)),
            ],
            out_specs=pl.BlockSpec((tile_n, out_channels), lambda i: (i, 0)),
        ),
        compiler_params=pltpu.CompilerParams(
            dimension_semantics=("parallel",)),   # v7x: shard rows over 2 TCs
        cost_estimate=pl.CostEstimate(
            flops=2 * n * (STRIDE * c_in) * crosssize,
            transcendentals=0,
            bytes_accessed=4 * (n * (STRIDE * c_in + out_channels)
                                + STRIDE * c_in * crosssize + crosssize),
        ),
    )(x_cat, w_cat, bias)

    # rows are (lout, b)-ordered -> free reshape, no transpose needed.
    return out.reshape(lout, B, out_channels)


def _reference(x, w_conv, b_conv):
    """Pure-JAX reference for the PyTorch forward."""
    L, B, c_in = x.shape
    xb = jnp.transpose(x, (1, 2, 0))                         # (B, C, L)

    x1 = xb[:, :ORIFEANUM, :]
    pe, po = x1[:, :, 0::2], x1[:, :, 1::2]
    avg, mx, mn = 0.5 * (pe + po), jnp.maximum(pe, po), jnp.minimum(pe, po)
    pools = ([avg[:, k:k + 1] for k in range(5)]
             + [pe[:, 5:6], po[:, 6:7], mx[:, 7:8], mn[:, 8:9], po[:, 9:10]]
             + [avg[:, k:k + 1] for k in range(10, 16)])
    x1 = jnp.concatenate(pools, axis=1)                      # (B, 16, L/2)

    conv = jax.lax.conv_general_dilated(
        xb, w_conv, window_strides=(STRIDE,), padding="VALID",
        dimension_numbers=("NCH", "OIH", "NCH")) + b_conv[None, :, None]

    return jnp.transpose(jnp.concatenate([x1, conv], axis=1), (2, 0, 1))


if __name__ == "__main__":
    fwd = jax.jit(seqconvs_forward, static_argnames=("tile_n",))

    def _run_case(L, B, inputsize, crosssize, seed, tile_n):
        key = jax.random.PRNGKey(seed)
        kx, kw, kb = jax.random.split(key, 3)
        x = jax.random.normal(kx, (L, B, inputsize), dtype=jnp.float32)
        w_conv = 0.1 * jax.random.normal(
            kw, (crosssize, inputsize, KERNEL_SIZE), dtype=jnp.float32)
        b_conv = 0.1 * jax.random.normal(kb, (crosssize,), dtype=jnp.float32)

        out = jax.block_until_ready(fwd(x, w_conv, b_conv, tile_n=tile_n))
        ref = jax.block_until_ready(_reference(x, w_conv, b_conv))

        assert out.shape == (L // STRIDE, B, ORIFEANUM + crosssize), out.shape
        assert jnp.allclose(out, ref, atol=1e-4, rtol=1e-4), "mismatch vs reference"

    # small shape, single tile
    _run_case(L=16, B=2, inputsize=24, crosssize=32, seed=0,
              tile_n=_DEFAULT_TILE_N)
    # multi-tile grid with a partial last tile (n = 160 rows, tile_n = 64)
    _run_case(L=80, B=4, inputsize=24, crosssize=32, seed=1, tile_n=64)

    print("KERNEL_OK")
</pallas_src>

<mosaic_0001>
module attributes {stable_mosaic.version = 11 : i64} {
  func.func @_seqconvs_kernel(%arg0: i32, %arg1: memref<16x48xf32, #tpu.memory_space<vmem>>, %arg2: memref<48x32xf32, #tpu.memory_space<vmem>>, %arg3: memref<1x32xf32, #tpu.memory_space<vmem>>, %arg4: memref<16x48xf32, #tpu.memory_space<vmem>>) attributes {dimension_semantics = [#tpu.dimension_semantics<parallel>], iteration_bounds = array<i64: 1>, scalar_prefetch = 0 : i64, scratch_operands = 0 : i64, tpu.core_type = #tpu.core_type<tc>, window_params = [{transform_indices = @transform_0, window_bounds = array<i64: 16, 48>}, {pipeline_mode = #tpu.pipeline_mode<synchronous>, transform_indices = @transform_1, window_bounds = array<i64: 48, 32>}, {pipeline_mode = #tpu.pipeline_mode<synchronous>, transform_indices = @transform_2, window_bounds = array<i64: 1, 32>}, {transform_indices = @transform_3, window_bounds = array<i64: 16, 48>}]} {
    %c0 = arith.constant 0 : index
    %c0_0 = arith.constant 0 : index
    %0 = vector.load %arg1[%c0, %c0_0] : memref<16x48xf32, #tpu.memory_space<vmem>>, vector<16x48xf32>
    %c0_1 = arith.constant 0 : index
    %c0_2 = arith.constant 0 : index
    %1 = vector.load %arg2[%c0_1, %c0_2] : memref<48x32xf32, #tpu.memory_space<vmem>>, vector<48x32xf32>
    %cst = arith.constant dense<0.000000e+00> : vector<16x32xf32>
    %2 = tpu.matmul %0, %1, %cst {dimension_numbers = #tpu.dot_dimension_numbers<[1], [0], [0], [1], [0, 0, 1, 1], [], []>} : vector<16x48xf32>, vector<48x32xf32>, vector<16x32xf32> -> vector<16x32xf32>
    %c0_3 = arith.constant 0 : index
    %c0_4 = arith.constant 0 : index
    %3 = vector.load %arg3[%c0_3, %c0_4] : memref<1x32xf32, #tpu.memory_space<vmem>>, vector<1x32xf32>
    %4 = vector.broadcast %3 : vector<1x32xf32> to vector<16x32xf32>
    %5 = arith.addf %2, %4 : vector<16x32xf32>
    %6 = vector.extract_strided_slice %0 {offsets = [0, 0], sizes = [16, 16], strides = [1, 1]} : vector<16x48xf32> to vector<16x16xf32>
    %7 = vector.extract_strided_slice %0 {offsets = [0, 24], sizes = [16, 16], strides = [1, 1]} : vector<16x48xf32> to vector<16x16xf32>
    %8 = arith.addf %6, %7 : vector<16x16xf32>
    %cst_5 = arith.constant 5.000000e-01 : f32
    %9 = vector.broadcast %cst_5 : f32 to vector<16x16xf32>
    %10 = arith.mulf %9, %8 : vector<16x16xf32>
    %11 = arith.maximumf %6, %7 : vector<16x16xf32>
    %12 = arith.minimumf %6, %7 : vector<16x16xf32>
    %13 = tpu.iota {dimensions = array<i32: 1>} : vector<1x16xi32>
    %c5_i32 = arith.constant 5 : i32
    %14 = vector.broadcast %c5_i32 : i32 to vector<1x16xi32>
    %15 = arith.cmpi eq, %13, %14 : vector<1x16xi32>
    %c6_i32 = arith.constant 6 : i32
    %16 = vector.broadcast %c6_i32 : i32 to vector<1x16xi32>
    %17 = arith.cmpi eq, %13, %16 : vector<1x16xi32>
    %c9_i32 = arith.constant 9 : i32
    %18 = vector.broadcast %c9_i32 : i32 to vector<1x16xi32>
    %19 = arith.cmpi eq, %13, %18 : vector<1x16xi32>
    %20 = arith.ori %17, %19 : vector<1x16xi1>
    %c7_i32 = arith.constant 7 : i32
    %21 = vector.broadcast %c7_i32 : i32 to vector<1x16xi32>
    %22 = arith.cmpi eq, %13, %21 : vector<1x16xi32>
    %c8_i32 = arith.constant 8 : i32
    %23 = vector.broadcast %c8_i32 : i32 to vector<1x16xi32>
    %24 = arith.cmpi eq, %13, %23 : vector<1x16xi32>
    %25 = vector.shape_cast %24 : vector<1x16xi1> to vector<1x16xi1>
    %26 = vector.broadcast %25 : vector<1x16xi1> to vector<16x16xi1>
    %27 = arith.select %26, %12, %10 : vector<16x16xi1>, vector<16x16xf32>
    %28 = vector.shape_cast %22 : vector<1x16xi1> to vector<1x16xi1>
    %29 = vector.broadcast %28 : vector<1x16xi1> to vector<16x16xi1>
    %30 = arith.select %29, %11, %27 : vector<16x16xi1>, vector<16x16xf32>
    %31 = vector.shape_cast %20 : vector<1x16xi1> to vector<1x16xi1>
    %32 = vector.broadcast %31 : vector<1x16xi1> to vector<16x16xi1>
    %33 = arith.select %32, %7, %30 : vector<16x16xi1>, vector<16x16xf32>
    %34 = vector.shape_cast %15 : vector<1x16xi1> to vector<1x16xi1>
    %35 = vector.broadcast %34 : vector<1x16xi1> to vector<16x16xi1>
    %36 = arith.select %35, %6, %33 : vector<16x16xi1>, vector<16x16xf32>
    %c0_6 = arith.constant 0 : index
    %c0_7 = arith.constant 0 : index
    %37 = vector.load %arg4[%c0_6, %c0_7] : memref<16x48xf32, #tpu.memory_space<vmem>>, vector<16x16xf32>
    tpu.vector_store %arg4[%c0_6, %c0_7], %36 {strides = array<i32>} : memref<16x48xf32, #tpu.memory_space<vmem>>, vector<16x16xf32>,
    %c0_8 = arith.constant 0 : index
    %c16 = arith.constant 16 : index
    %38 = vector.load %arg4[%c0_8, %c16] : memref<16x48xf32, #tpu.memory_space<vmem>>, vector<16x32xf32>
    tpu.vector_store %arg4[%c0_8, %c16], %5 {strides = array<i32>} : memref<16x48xf32, #tpu.memory_space<vmem>>, vector<16x32xf32>,
    return
  }
  func.func @transform_0(%arg0: i32) -> (i32, i32) {
    %c0_i32 = arith.constant 0 : i32
    %c0_i32_0 = arith.constant 0 : i32
    return %arg0, %c0_i32 : i32, i32
  }
  func.func @transform_1(%arg0: i32) -> (i32, i32) {
    %c0_i32 = arith.constant 0 : i32
    %c0_i32_0 = arith.constant 0 : i32
    %c0_i32_1 = arith.constant 0 : i32
    return %c0_i32, %c0_i32_0 : i32, i32
  }
  func.func @transform_2(%arg0: i32) -> (i32, i32) {
    %c0_i32 = arith.constant 0 : i32
    %c0_i32_0 = arith.constant 0 : i32
    %c0_i32_1 = arith.constant 0 : i32
    return %c0_i32, %c0_i32_0 : i32, i32
  }
  func.func @transform_3(%arg0: i32) -> (i32, i32) {
    %c0_i32 = arith.constant 0 : i32
    %c0_i32_0 = arith.constant 0 : i32
    return %arg0, %c0_i32 : i32, i32
  }
}

</mosaic_0001>

<llo_original>
// kernel: seqconvs_forward.1
$region0: #{seqconvs_forward.1}
  #allocation0 [shape = 'u32[]', space=smem, size = 0x4, offset = 0x4, fixed_abs, tag = 'smem constant byte address 0x4 - core index']
  #allocation1 [shape = 'u32[144,128]{1,0:T(1,128)}', space=vmem, size = 0x12000, scoped, tag = 'internal scratch']
  %s0 = inlined_call_operand.vmem [shape: f32[16,48], index: 0, kind: input, shape index: {}]
  %s1 = inlined_call_operand.vmem [shape: f32[48,32], index: 1, kind: input, shape index: {}]
  %s2 = inlined_call_operand.vmem [shape: f32[1,32], index: 2, kind: input, shape index: {}]
  %s3 = inlined_call_operand.hbm [shape: f32[16,48], index: 3, kind: output, shape index: {}]
  %s4 = sld [smem:[#allocation0]]
  $region22: #{seqconvs_forward.1} parent=0
    _
  %s6 = ssub.s32 1, %s4
  %s7 = scalar_select 0, %s6, %s4
  $region1: #{seqconvs_forward.1} parent=0
    #allocation2 [shape = 'u8[8192]{0}', space=vmem, size = 0x2000, scoped, tag = 'output window, operand 0, single buffered']
    #allocation3 [shape = 's32[1]{0}', space=sflag, size = 0x4, scoped, tag = 'scoped memory for seqconvs_forward.1']
    %8 = vsyncpa [#allocation3], 0
    // Predicated region
    $region2: #{seqconvs_forward.1} parent=1 // pred_check
      _
    $region3: #{seqconvs_forward.1} parent=1 // pred_check_branch
      %10 = sbr.rel (0) target = $region5
    $region4: #{seqconvs_forward.1} parent=1 // pred_region
      _
    $region5: #{seqconvs_forward.1} parent=1 // pred_fallthru
      _
    // Predicated region
    $region6: #{seqconvs_forward.1} parent=1 // pred_check
      _
    $region7: #{seqconvs_forward.1} parent=1 // pred_check_branch
      %12 = sbr.rel (0) target = $region9
    $region8: #{seqconvs_forward.1} parent=1 // pred_region
      _
    $region9: #{seqconvs_forward.1} parent=1 // pred_fallthru
      _
    // Predicated region
    $region10: #{seqconvs_forward.1} parent=1 // pred_check
      _
    $region11: #{seqconvs_forward.1} parent=1 // pred_check_branch
      %14 = sbr.rel (0) target = $region13
    $region12: #{seqconvs_forward.1} parent=1 // pred_region
      _
    $region13: #{seqconvs_forward.1} parent=1 // pred_fallthru
      _
    %v15 = vld [vmem:[%s0] sm:$0xff]
    %v16 = vld [vmem:[%s0 + $0x8] sm:$0xff]
    %v17 = vld [vmem:[%s1] sm:$0xff]
    %v18 = vld [vmem:[%s1 + $0x8] sm:$0xff]
    %v19 = vld [vmem:[%s1 + $0x10] sm:$0xff]
    %v20 = vld [vmem:[%s1 + $0x18] sm:$0xff]
    %v21 = vld [vmem:[%s1 + $0x20] sm:$0xff]
    %v22 = vld [vmem:[%s1 + $0x28] sm:$0xff]
    %v23 = vld [vmem:[%s2] sm:$0x1]
    %v25 = vlaneseq
    %v26 = vshrl.u32 %v25, 7
    %v27 = vsub.s32 0, %v26
    %v28 = vrot.slane %v23, %v27
    %vm30 = vcmask 392192
    %v32 = vsel %vm30, %v15, 0
    %v35 = vsel %vm30, %v16, 0
    %37 = vmatprep.subr.mxu0 0.0
    %38 = vmatpush1.msra.mxu0 0.0
    %39 = vmatprep.subr.mxu0 0.0
    %40 = vmatpush1.msra.mxu0 0.0
    %41 = vmatprep.subr.mxu0 0.0
    %42 = vmatpush1.msra.mxu0 0.0
    %43 = vmatprep.subr.mxu0 0.0
    %44 = vmatpush1.msra.mxu0 0.0
    %45 = vmatprep.subr.mxu0 0.0
    %46 = vmatpush1.msra.mxu0 0.0
    %47 = vmatprep.subr.mxu0 0.0
    %48 = vmatpush1.msra.mxu0 0.0
    %49 = vmatprep.subr.mxu0 0.0
    %50 = vmatpush1.msra.mxu0 0.0
    %51 = vmatprep.subr.mxu0 0.0
    %52 = vmatpush1.msra.mxu0 0.0
    %53 = vmatprep.subr.mxu0 0.0
    %54 = vmatpush1.msra.mxu0 0.0
    %55 = vmatprep.subr.mxu0 0.0
    %56 = vmatpush1.msra.mxu0 0.0
    %57 = vmatprep.subr.mxu0 0.0
    %58 = vmatpush1.msra.mxu0 %v22
    %59 = vmatprep.subr.mxu0 0.0
    %60 = vmatpush1.msra.mxu0 %v21
    %61 = vmatprep.subr.mxu0 0.0
    %62 = vmatpush1.msra.mxu0 %v20
    %63 = vmatprep.subr.mxu0 0.0
    %64 = vmatpush1.msra.mxu0 %v19
    %65 = vmatprep.subr.mxu0 0.0
    %66 = vmatpush1.msra.mxu0 %v18
    %67 = vmatprep.subr.mxu0 0.0
    %68 = vmatpush1.msra.mxu0 %v17
    %69 = vmatprep.subr.mxu0 0.0
    %70 = vmatpush2.msra.mxu0 0.0
    %71 = vmatprep.subr.mxu0 0.0
    %72 = vmatpush2.msra.mxu0 0.0
    %73 = vmatprep.subr.mxu0 0.0
    %74 = vmatpush2.msra.mxu0 0.0
    %75 = vmatprep.subr.mxu0 0.0
    %76 = vmatpush2.msra.mxu0 0.0
    %77 = vmatprep.subr.mxu0 0.0
    %78 = vmatpush2.msra.mxu0 0.0
    %79 = vmatprep.subr.mxu0 0.0
    %80 = vmatpush2.msra.mxu0 0.0
    %81 = vmatprep.subr.mxu0 0.0
    %82 = vmatpush2.msra.mxu0 0.0
    %83 = vmatprep.subr.mxu0 0.0
    %84 = vmatpush2.msra.mxu0 0.0
    %85 = vmatprep.subr.mxu0 0.0
    %86 = vmatpush2.msra.mxu0 0.0
    %87 = vmatprep.subr.mxu0 0.0
    %88 = vmatpush2.msra.mxu0 0.0
    %89 = vmatprep.subr.mxu0 0.0
    %90 = vmatpush2.msra.mxu0 0.0
    %91 = vmatprep.subr.mxu0 0.0
    %92 = vmatpush2.msra.mxu0 0.0
    %93 = vmatprep.subr.mxu0 0.0
    %94 = vmatpush2.msra.mxu0 0.0
    %95 = vmatprep.subr.mxu0 0.0
    %96 = vmatpush2.msra.mxu0 0.0
    %97 = vmatprep.subr.mxu0 0.0
    %98 = vmatpush2.msra.mxu0 0.0
    %99 = vmatprep.subr.mxu0 0.0
    %100 = vmatpush2.msra.mxu0 0.0
    %101 = vmatprep.mubr.f32.mxu0 0.0
    %102 = vmatmul.mubr.f32.gmra.mxu0 %v32
    %v103 = vpop.f32.mrf.mxu0
    %v104 = vadd.f32 %v28, %v103
    %v105 = vpop.f32.mrf.mxu0
    %106 = vmatprep.mubr.f32.mxu0 0.0
    %107 = vmatmul.mubr.f32.gmra.mxu0 %v35
    %v108 = vpop.f32.mrf.mxu0
    %v109 = vadd.f32 %v28, %v108
    %v110 = vpop.f32.mrf.mxu0
    %111 = vdwg.mxu0
    %112 = vrot.lane.b32.xlu0 %v15, 104
    %v113 = vpop.permute.xlu0 %112
    %114 = vrot.lane.b32.xlu0 %v16, 104
    %v115 = vpop.permute.xlu0 %114
    %v118 = vadd.f32 %v15, %v113
    %v119 = vadd.f32 %v16, %v115
    %v120 = vmul.f32 %v118, 0.5
    %v121 = vmul.f32 %v119, 0.5
    %v122 = vmax.f32 %v15, %v113
    %v123 = vmax.f32 %v16, %v115
    %v124 = vmin.f32 %v15, %v113
    %v125 = vmin.f32 %v16, %v115
    %v126 = vlaneseq
    %v127 = vand.u32 %v126, 127
    %vm128 = vcmp.eq.s32.totalorder %v127, 5
    %vm129 = vcmp.eq.s32.totalorder %v127, 6
    %vm130 = vcmp.eq.s32.totalorder %v127, 9
    %vm131 = vmor %vm129, %vm130
    %vm132 = vcmp.eq.s32.totalorder %v127, 7
    %vm133 = vcmp.eq.s32.totalorder %v127, 8
    %v134 = vsel %vm133, 1, 0
    %vm135 = vcmp.eq.s32.totalorder %v134, 1
    %v136 = vsel %vm135, %v124, %v120
    %v137 = vsel %vm135, %v125, %v121
    %v138 = vsel %vm132, 1, 0
    %vm139 = vcmp.eq.s32.totalorder %v138, 1
    %v140 = vsel %vm139, %v122, %v136
    %v141 = vsel %vm139, %v123, %v137
    %v142 = vsel %vm131, 1, 0
    %vm143 = vcmp.eq.s32.totalorder %v142, 1
    %v144 = vsel %vm143, %v113, %v140
    %v145 = vsel %vm143, %v115, %v141
    %v146 = vsel %vm128, 1, 0
    %vm147 = vcmp.eq.s32.totalorder %v146, 1
    %v148 = vsel %vm147, %v15, %v144
    %v149 = vsel %vm147, %v16, %v145
    %vm150 = vcmask 130048
    %151 = vst.msk [vmem:[#allocation2] sm:$0xff] %vm150, %v148
    %152 = vst.msk [vmem:[#allocation2 + $0x8] sm:$0xff] %vm150, %v149
    %155 = vrot.lane.b32.xlu0 %v104, 16
    %v156 = vpop.permute.xlu0 %155
    %157 = vrot.lane.b32.xlu0 %v109, 16
    %v158 = vpop.permute.xlu0 %157
    %vm161 = vcmask 392320
    %162 = vst.msk [vmem:[#allocation2] sm:$0xff] %vm161, %v156
    %163 = vst.msk [vmem:[#allocation2 + $0x8] sm:$0xff] %vm161, %v158
    // Predicated region
    $region14: #{seqconvs_forward.1} parent=1 // pred_check
      _
    $region15: #{seqconvs_forward.1} parent=1 // pred_check_branch
      %165 = sbr.rel (0) target = $region17
    $region16: #{seqconvs_forward.1} parent=1 // pred_region
      %s167 = ssub.s32 256, 256
      %168 = vsyncadd [#allocation3], %s167
      %s169 = sshll.u32 [#allocation2], 4
      %s170 = int_to_ptr.vmem [resolvable:$true] %s169
      %175 = dma.vmem_to_hbm [thread:$0]  %s170, 256, %s3, [#allocation3], 128, 128, 8
    $region17: #{seqconvs_forward.1} parent=1 // pred_fallthru
      _
    // Predicated region
    $region18: #{seqconvs_forward.1} parent=1 // pred_check
      _
    $region19: #{seqconvs_forward.1} parent=1 // pred_check_branch
      %177 = sbr.rel (0) target = $region21
    $region20: #{seqconvs_forward.1} parent=1 // pred_region
      %178 = dma.done [#allocation3], 256
    $region21: #{seqconvs_forward.1} parent=1 // pred_fallthru
      _
    %179 = vsyncpa [#allocation3], 1

</llo_original>
